<compile_context>
chip_gen: v7x
topology: tpu7x:2x2x1
jax: 0.10.0
libtpu: 0.0.40
codegen_flags: <defaults>
</compile_context>

<pallas_src>
import jax
import jax.numpy as jnp
from jax.experimental import pallas as pl
from jax.experimental.pallas import tpu as pltpu

LN_EPS = 1e-5  # torch.nn.LayerNorm default


def _round_up(a, b):
    return (a + b - 1) // b * b


def _vmem_budget():
    """Physical VMEM of the current TPU generation, with ~15% headroom."""
    cap = 64 << 20  # conservative fallback (v7x per-TensorCore VMEM)
    try:
        cap = int(pltpu.get_tpu_info().vmem_capacity_bytes)
    except Exception:
        pass
    return int(cap * 0.85)


def _layernorm(x, d_real, d_pad):
    """f32 LayerNorm over the real d_model lanes, stats fused into one traversal."""
    if d_pad != d_real:
        lane = jax.lax.broadcasted_iota(jnp.int32, (1, d_pad), 1)
        x = x * (lane < d_real).astype(jnp.float32)
    inv_d = 1.0 / float(d_real)
    s = jnp.sum(x, axis=-1, keepdims=True)
    sq = jnp.sum(x * x, axis=-1, keepdims=True)
    mean = s * inv_d
    var = jnp.maximum(sq * inv_d - mean * mean, 0.0)  # E[x^2] - mu^2, clamped
    return (x - mean) * jax.lax.rsqrt(var + LN_EPS)


def _make_single_col_kernel(d_real, d_pad, matmul_dtype):
    """One column block: the whole (Dp, Dp) weight stays resident in VMEM."""

    def kernel(x_ref, w_ref, p_ref, o_ref):
        x = x_ref[...].astype(jnp.float32)
        xn = _layernorm(x, d_real, d_pad)
        xn = xn * p_ref[1, :] + p_ref[2, :]          # LN gamma / beta
        y = jnp.dot(xn.astype(matmul_dtype), w_ref[...],
                    preferred_element_type=jnp.float32)
        y = y + p_ref[0, :]                          # linear bias
        # dropout in eval mode is identity
        # TODO(synk): training-mode dropout would use pltpu.prng_seed + stateful_bernoulli.
        o_ref[...] = (x + y).astype(o_ref.dtype)

    return kernel


def _make_col_tiled_kernel(d_real, d_pad, tn, matmul_dtype):
    """Column-tiled weight (large d_model / v7x): LN output cached in a VMEM scratch."""

    def kernel(x_ref, w_ref, p_ref, o_ref, xn_ref):
        j = pl.program_id(1)

        @pl.when(j == 0)
        def _():
            x = x_ref[...].astype(jnp.float32)
            xn = _layernorm(x, d_real, d_pad)
            xn_ref[...] = (xn * p_ref[1, :] + p_ref[2, :]).astype(matmul_dtype)

        col0 = pl.multiple_of(j * tn, 128)
        y = jnp.dot(xn_ref[...], w_ref[...], preferred_element_type=jnp.float32)
        y = y + p_ref[0, pl.ds(col0, tn)]
        x_res = x_ref[:, pl.ds(col0, tn)].astype(jnp.float32)
        o_ref[...] = (x_res + y).astype(o_ref.dtype)

    return kernel


def sublayer_connection(x, w, b, gamma, beta, *, tm=1024, matmul_dtype=jnp.bfloat16):
    """x: (B, S, D); w: (D, D) laid out for xn @ w; b/gamma/beta: (D,).

    Computes x + Linear(LayerNorm(x)) (dropout in eval mode) in one fused kernel.
    """
    B, S, D = x.shape
    N = B * S

    itemsize = jnp.dtype(x.dtype).itemsize
    w_item = jnp.dtype(matmul_dtype).itemsize
    budget = _vmem_budget()

    # Lane-dense padding of d_model to a multiple of 128 (unmasked full-lane stores).
    Dp = max(_round_up(D, 128), 128)

    # Column-tile the weight only when it would eat too much VMEM (v7x large-D path).
    if Dp * Dp * w_item <= budget // 3:
        tn = Dp
    else:
        tn = max(128, min(Dp, (budget // 3) // (2 * Dp * w_item) // 128 * 128))
        Dp = _round_up(Dp, tn)
    multi_col = tn != Dp
    n_col = Dp // tn

    # Row tile: as large as the VMEM budget allows, sublane-aligned, and >= 2 blocks
    # when possible so the "parallel" grid axis can feed both v7x TensorCores.
    sub = {4: 8, 2: 16, 1: 32}.get(itemsize, 8)
    tm_eff = max(sub, min(tm, _round_up(N, sub)))
    if N >= 2 * sub:
        tm_eff = min(tm_eff, _round_up((N + 1) // 2, sub))

    w_buffers = 2 if multi_col else 1            # constant index_map -> single buffer
    fixed_bytes = w_buffers * Dp * tn * w_item + 8 * Dp * 4

    def _tile_bytes(t):
        bts = 2 * t * Dp * itemsize              # double-buffered x tiles
        bts += 2 * t * tn * itemsize             # double-buffered out tiles
        bts += 4 * t * Dp * 4                    # in-kernel f32 temporaries (x, xn, y, cast)
        if multi_col:
            bts += t * Dp * w_item               # LN-output scratch
        return bts

    while tm_eff > sub and fixed_bytes + _tile_bytes(tm_eff) > budget:
        tm_eff = max(sub, _round_up(tm_eff // 2, sub))

    # Host-side pad only on the lane dim; rows handled by a cdiv grid + partial block.
    x2 = x.reshape(N, D)
    if Dp != D:
        x2 = jnp.pad(x2, ((0, 0), (0, Dp - D)))

    # TODO(synk): optional fp8 weight path for v7x MXU at very large D (precision trade-off).
    w_p = jnp.zeros((Dp, Dp), matmul_dtype).at[:D, :D].set(w.astype(matmul_dtype))

    # One (8, Dp) parameter slab: row 0 = linear bias, row 1 = LN gamma, row 2 = LN beta.
    params = jnp.zeros((8, Dp), jnp.float32)
    params = params.at[0, :D].set(b.astype(jnp.float32))
    params = params.at[1, :D].set(gamma.astype(jnp.float32))
    params = params.at[2, :D].set(beta.astype(jnp.float32))

    vmem_bytes = fixed_bytes + _tile_bytes(tm_eff)
    vmem_limit = min(int(vmem_bytes * 1.25) + (4 << 20), budget)

    if multi_col:
        kernel = _make_col_tiled_kernel(D, Dp, tn, matmul_dtype)
        scratch = [pltpu.VMEM((tm_eff, Dp), matmul_dtype)]
        w_spec = pl.BlockSpec((Dp, tn), lambda i, j: (0, j))
    else:
        kernel = _make_single_col_kernel(D, Dp, matmul_dtype)
        scratch = []
        w_spec = pl.BlockSpec((Dp, tn), lambda i, j: (0, j),
                              pipeline_mode=pl.Buffered(1))
    p_spec = pl.BlockSpec((8, Dp), lambda i, j: (0, 0),
                          pipeline_mode=pl.Buffered(1))

    cost = pl.CostEstimate(
        flops=2 * N * Dp * Dp,
        transcendentals=0,
        bytes_accessed=2 * N * Dp * itemsize + Dp * Dp * w_item + 8 * Dp * 4,
    )

    out = pl.pallas_call(
        kernel,
        out_shape=jax.ShapeDtypeStruct((N, Dp), x.dtype),
        grid_spec=pltpu.PrefetchScalarGridSpec(
            num_scalar_prefetch=0,
            grid=(pl.cdiv(N, tm_eff), n_col),
            in_specs=[
                pl.BlockSpec((tm_eff, Dp), lambda i, j: (i, 0)),   # x rows tile
                w_spec,                                            # weight (resident/tiled)
                p_spec,                                            # bias/gamma/beta slab
            ],
            out_specs=pl.BlockSpec((tm_eff, tn), lambda i, j: (i, j)),
            scratch_shapes=scratch,
        ),
        compiler_params=pltpu.CompilerParams(
            dimension_semantics=("parallel", "arbitrary"),
            vmem_limit_bytes=vmem_limit,
        ),
        cost_estimate=cost,
    )(x2, w_p, params)

    if Dp != D:
        out = out[:, :D]
    return out.reshape(B, S, D)


def sublayer_connection_ref(x, w, b, gamma, beta):
    xf = x.astype(jnp.float32)
    mean = jnp.mean(xf, axis=-1, keepdims=True)
    var = jnp.mean((xf - mean) ** 2, axis=-1, keepdims=True)
    xn = (xf - mean) / jnp.sqrt(var + LN_EPS) * gamma + beta
    y = xn @ w + b
    return (xf + y).astype(x.dtype)


if __name__ == "__main__":
    key = jax.random.PRNGKey(0)
    kx, kw, kb = jax.random.split(key, 3)

    batch, seq, d_model = 2, 8, 32
    x = jax.random.normal(kx, (batch, seq, d_model), dtype=jnp.float32)

    # Deterministic parameter init (mimic nn.Linear uniform(-1/sqrt(D), 1/sqrt(D)))
    bound = 1.0 / (d_model ** 0.5)
    w = jax.random.uniform(kw, (d_model, d_model), jnp.float32, -bound, bound)
    b = jax.random.uniform(kb, (d_model,), jnp.float32, -bound, bound)
    gamma = jnp.ones((d_model,), jnp.float32)   # nn.LayerNorm weight init
    beta = jnp.zeros((d_model,), jnp.float32)   # nn.LayerNorm bias init

    ref = sublayer_connection_ref(x, w, b, gamma, beta)

    # Strict parity check: f32 matmul operands.
    out_f32 = jax.block_until_ready(
        sublayer_connection(x, w, b, gamma, beta, matmul_dtype=jnp.float32))
    assert out_f32.shape == (batch, seq, d_model)
    assert jnp.allclose(out_f32, ref, atol=1e-4, rtol=1e-4)

    # Default perf path: bf16 matmul operands, f32 accumulation / LN stats.
    # NOTE: deliberately relaxed precision vs the f32 PyTorch reference (inference path).
    out_bf16 = jax.block_until_ready(sublayer_connection(x, w, b, gamma, beta))
    assert out_bf16.shape == (batch, seq, d_model)
    assert jnp.allclose(out_bf16, ref, atol=5e-2, rtol=5e-2)

    print("KERNEL_OK")
</pallas_src>

<mosaic_0001>
module attributes {stable_mosaic.version = 11 : i64} {
  func.func @kernel(%arg0: i32, %arg1: i32, %arg2: memref<8x128xf32, #tpu.memory_space<vmem>>, %arg3: memref<128x128xf32, #tpu.memory_space<vmem>>, %arg4: memref<8x128xf32, #tpu.memory_space<vmem>>, %arg5: memref<8x128xf32, #tpu.memory_space<vmem>>) attributes {dimension_semantics = [#tpu.dimension_semantics<parallel>, #tpu.dimension_semantics<arbitrary>], iteration_bounds = array<i64: 2, 1>, scalar_prefetch = 0 : i64, scratch_operands = 0 : i64, tpu.core_type = #tpu.core_type<tc>, window_params = [{transform_indices = @transform_0, window_bounds = array<i64: 8, 128>}, {pipeline_mode = #tpu.pipeline_mode<synchronous>, transform_indices = @transform_1, window_bounds = array<i64: 128, 128>}, {pipeline_mode = #tpu.pipeline_mode<synchronous>, transform_indices = @transform_2, window_bounds = array<i64: 8, 128>}, {transform_indices = @transform_3, window_bounds = array<i64: 8, 128>}]} {
    %c0 = arith.constant 0 : index
    %c0_0 = arith.constant 0 : index
    %0 = vector.load %arg2[%c0, %c0_0] : memref<8x128xf32, #tpu.memory_space<vmem>>, vector<8x128xf32>
    %1 = tpu.iota {dimensions = array<i32: 1>} : vector<1x128xi32>
    %c32_i32 = arith.constant 32 : i32
    %2 = vector.broadcast %c32_i32 : i32 to vector<1x128xi32>
    %3 = arith.cmpi slt, %1, %2 : vector<1x128xi32>
    %4 = arith.extui %3 : vector<1x128xi1> to vector<1x128xi32>
    %5 = arith.sitofp %4 : vector<1x128xi32> to vector<1x128xf32>
    %6 = vector.broadcast %5 : vector<1x128xf32> to vector<8x128xf32>
    %7 = arith.mulf %0, %6 : vector<8x128xf32>
    %cst = arith.constant dense<0.000000e+00> : vector<8xf32>
    %8 = vector.multi_reduction <add>, %7, %cst [1] : vector<8x128xf32> to vector<8xf32>
    %9 = vector.shape_cast %8 : vector<8xf32> to vector<8x1xf32>
    %10 = arith.mulf %7, %7 : vector<8x128xf32>
    %cst_1 = arith.constant dense<0.000000e+00> : vector<8xf32>
    %11 = vector.multi_reduction <add>, %10, %cst_1 [1] : vector<8x128xf32> to vector<8xf32>
    %12 = vector.shape_cast %11 : vector<8xf32> to vector<8x1xf32>
    %cst_2 = arith.constant 3.125000e-02 : f32
    %13 = vector.broadcast %cst_2 : f32 to vector<8x1xf32>
    %14 = arith.mulf %9, %13 : vector<8x1xf32>
    %cst_3 = arith.constant 3.125000e-02 : f32
    %15 = vector.broadcast %cst_3 : f32 to vector<8x1xf32>
    %16 = arith.mulf %12, %15 : vector<8x1xf32>
    %17 = arith.mulf %14, %14 : vector<8x1xf32>
    %18 = arith.subf %16, %17 : vector<8x1xf32>
    %cst_4 = arith.constant 0.000000e+00 : f32
    %19 = vector.broadcast %cst_4 : f32 to vector<8x1xf32>
    %20 = arith.maximumf %18, %19 : vector<8x1xf32>
    %21 = vector.broadcast %14 : vector<8x1xf32> to vector<8x128xf32>
    %22 = arith.subf %7, %21 : vector<8x128xf32>
    %cst_5 = arith.constant 9.99999974E-6 : f32
    %23 = vector.broadcast %cst_5 : f32 to vector<8x1xf32>
    %24 = arith.addf %20, %23 : vector<8x1xf32>
    %25 = math.rsqrt %24 : vector<8x1xf32>
    %26 = vector.broadcast %25 : vector<8x1xf32> to vector<8x128xf32>
    %27 = arith.mulf %22, %26 : vector<8x128xf32>
    %c1 = arith.constant 1 : index
    %c0_6 = arith.constant 0 : index
    %28 = vector.load %arg4[%c1, %c0_6] : memref<8x128xf32, #tpu.memory_space<vmem>>, vector<1x128xf32>
    %29 = vector.shape_cast %28 : vector<1x128xf32> to vector<128xf32>
    %30 = vector.shape_cast %29 : vector<128xf32> to vector<1x128xf32>
    %31 = vector.broadcast %30 : vector<1x128xf32> to vector<8x128xf32>
    %32 = arith.mulf %27, %31 : vector<8x128xf32>
    %c2 = arith.constant 2 : index
    %c0_7 = arith.constant 0 : index
    %33 = vector.load %arg4[%c2, %c0_7] : memref<8x128xf32, #tpu.memory_space<vmem>>, vector<1x128xf32>
    %34 = vector.shape_cast %33 : vector<1x128xf32> to vector<128xf32>
    %35 = vector.shape_cast %34 : vector<128xf32> to vector<1x128xf32>
    %36 = vector.broadcast %35 : vector<1x128xf32> to vector<8x128xf32>
    %37 = arith.addf %32, %36 : vector<8x128xf32>
    %c0_8 = arith.constant 0 : index
    %c0_9 = arith.constant 0 : index
    %38 = vector.load %arg3[%c0_8, %c0_9] : memref<128x128xf32, #tpu.memory_space<vmem>>, vector<128x128xf32>
    %cst_10 = arith.constant dense<0.000000e+00> : vector<8x128xf32>
    %39 = tpu.matmul %37, %38, %cst_10 {dimension_numbers = #tpu.dot_dimension_numbers<[1], [0], [0], [1], [0, 0, 1, 1], [], []>} : vector<8x128xf32>, vector<128x128xf32>, vector<8x128xf32> -> vector<8x128xf32>
    %c0_11 = arith.constant 0 : index
    %c0_12 = arith.constant 0 : index
    %40 = vector.load %arg4[%c0_11, %c0_12] : memref<8x128xf32, #tpu.memory_space<vmem>>, vector<1x128xf32>
    %41 = vector.shape_cast %40 : vector<1x128xf32> to vector<128xf32>
    %42 = vector.shape_cast %41 : vector<128xf32> to vector<1x128xf32>
    %43 = vector.broadcast %42 : vector<1x128xf32> to vector<8x128xf32>
    %44 = arith.addf %39, %43 : vector<8x128xf32>
    %45 = arith.addf %0, %44 : vector<8x128xf32>
    %c0_13 = arith.constant 0 : index
    %c0_14 = arith.constant 0 : index
    %46 = vector.load %arg5[%c0_13, %c0_14] : memref<8x128xf32, #tpu.memory_space<vmem>>, vector<8x128xf32>
    tpu.vector_store %arg5[%c0_13, %c0_14], %45 {strides = array<i32>} : memref<8x128xf32, #tpu.memory_space<vmem>>, vector<8x128xf32>,
    return
  }
  func.func @transform_0(%arg0: i32, %arg1: i32) -> (i32, i32) {
    %c0_i32 = arith.constant 0 : i32
    %c0_i32_0 = arith.constant 0 : i32
    return %arg0, %c0_i32 : i32, i32
  }
  func.func @transform_1(%arg0: i32, %arg1: i32) -> (i32, i32) {
    %c0_i32 = arith.constant 0 : i32
    %c0_i32_0 = arith.constant 0 : i32
    return %c0_i32, %arg1 : i32, i32
  }
  func.func @transform_2(%arg0: i32, %arg1: i32) -> (i32, i32) {
    %c0_i32 = arith.constant 0 : i32
    %c0_i32_0 = arith.constant 0 : i32
    %c0_i32_1 = arith.constant 0 : i32
    return %c0_i32, %c0_i32_0 : i32, i32
  }
  func.func @transform_3(%arg0: i32, %arg1: i32) -> (i32, i32) {
    %c0_i32 = arith.constant 0 : i32
    return %arg0, %arg1 : i32, i32
  }
}

</mosaic_0001>

<llo_original>
// kernel: tpu_custom_call.1
$region0: #{tpu_custom_call.1}
  #allocation0 [shape = 'u32[]', space=smem, size = 0x4, offset = 0x4, fixed_abs, tag = 'smem constant byte address 0x4 - core index']
  #allocation1 [shape = 'u32[144,128]{1,0:T(1,128)}', space=vmem, size = 0x12000, scoped, tag = 'internal scratch']
  %s0 = inlined_call_operand.hbm [shape: f32[16,128], index: 0, kind: input, shape index: {}]
  %s1 = inlined_call_operand.hbm [shape: f32[128,128], index: 1, kind: input, shape index: {}]
  %s2 = inlined_call_operand.hbm [shape: f32[8,128], index: 2, kind: input, shape index: {}]
  %s3 = inlined_call_operand.hbm [shape: f32[16,128], index: 3, kind: output, shape index: {}]
  %s4 = sld [smem:[#allocation0]]
  $region57: #{tpu_custom_call.1} parent=0
    _
  %s6 = ssub.s32 1, %s4
  %s7 = scalar_select 0, %s6, %s4
  $region1: #{tpu_custom_call.1} parent=0
    #allocation2 [shape = 'u8[8192]{0}', space=vmem, size = 0x2000, scoped, tag = 'input window, operand 0']
    #allocation3 [shape = 's32[2]{0}', space=sflag, size = 0x8, scoped, tag = 'scoped memory for tpu_custom_call.1']
    #allocation4 [shape = 's32[2]{0}', space=sflag, size = 0x8, scoped, tag = 'scoped memory for tpu_custom_call.1']
    #allocation5 [shape = 'u8[65536]{0}', space=vmem, size = 0x10000, scoped, tag = 'input window, operand 1, single buffered']
    #allocation6 [shape = 's32[1]{0}', space=sflag, size = 0x4, scoped, tag = 'scoped memory for tpu_custom_call.1']
    #allocation7 [shape = 'u8[4096]{0}', space=vmem, size = 0x1000, scoped, tag = 'input window, operand 2, single buffered']
    #allocation8 [shape = 'u8[8192]{0}', space=vmem, size = 0x2000, scoped, tag = 'output window, operand 0']
    %8 = vsyncpa [#allocation3], 0
    %s9 = scalar_lea.sflag [#allocation3], 1
    %10 = vsyncpa %s9, 0
    %11 = vsyncpa [#allocation6], 0
    %12 = vsyncpa [#allocation4], 0
    %s13 = scalar_lea.sflag [#allocation4], 1
    %14 = vsyncpa %s13, 0
    loop: start=0, step=1, limit=4
    $region2: #{tpu_custom_call.1} parent=1 // loop_pre_header
      _
    $region3: #{tpu_custom_call.1} parent=1 // loop_header
      %s16 = sphi 0, %s20
      %p17 = scmp.ge.s32.totalorder %s16, 4
      %s23 = sphi 0, %s35
      %s24 = sphi 0, %s31
      %s25 = sphi 0, %s23
      %s26 = sphi 0, %s24
      %s27 = sphi 0, %s25
      %s28 = sphi 0, %s26
      %s38 = sphi 0, %s40
      %s41 = sphi 0, %s38
      %s42 = sphi 0, %s41
      %s58 = sphi 0, %s42
      %s64 = sphi 0, %s66
      %s67 = sphi 0, %s64
      %s68 = sphi 0, %s67
      %s84 = sphi 0, %s68
      %s88 = sphi 0, %s88
      %s90 = sphi 0, %s88
      %s91 = sphi 0, %s90
      %s105 = sphi 0, %s91
      %s113 = sphi 0, %s115
      %s116 = sphi 0, %s113
      %s117 = sphi 0, %s116
      %s133 = sphi 0, %s117
    $region4: #{tpu_custom_call.1} parent=1 // loop_header_branch
      %19 = sbr.rel (%p17) target = $region8
    $region5: #{tpu_custom_call.1} parent=1 // loop_body
      %s21 = ssub.s32 %s16, 1
      %s22 = ssub.s32 %s16, 2
      %s29 = sadd.s32 1, %s24
      %p30 = scmp.ge.s32.totalorder %s29, 1
      %s31 = scalar_select %p30, 0, %s29
      %s32 = sadd.s32 1, %s23
      %s33 = scalar_select %p30, %s32, %s23
      %p34 = scmp.ge.s32.totalorder %s33, 2
      %s35 = scalar_select %p34, 0, %s33
      %s36 = ssub.s32 %s23, %s35
      %p37 = scmp.eq.s32.totalorder %s36, 0
      %s39 = sadd.s32 %s38, 1
      %s40 = scalar_select %p37, %s38, %s39
      %p43 = pneg %p37
      %p44 = scmp.eq.s32.totalorder %s16, 1
      %p45 = por %p43, %p44
      %p46 = scmp.ne.s32.totalorder %s38, %s41
      %p47 = scmp.eq.s32.totalorder %s16, 0
      %p48 = por %p46, %p47
      %p49 = scmp.ne.s32.totalorder %s38, %s41
      %p50 = scmp.eq.s32.totalorder %s21, 1
      %p51 = por %p49, %p50
      %p52 = scmp.ne.s32.totalorder %s41, %s42
      %p53 = scmp.eq.s32.totalorder %s21, 0
      %p54 = por %p52, %p53
      %p55 = scmp.ne.s32.totalorder %s41, %s42
      %p56 = scmp.eq.s32.totalorder %s22, 1
      %p57 = por %p55, %p56
      %p59 = scmp.ne.s32.totalorder %s42, %s58
      %p60 = scmp.eq.s32.totalorder %s22, 0
      %p61 = por %p59, %p60
      %s62 = ssub.s32 %s24, %s31
      %p63 = scmp.eq.s32.totalorder %s62, 0
      %s65 = sadd.s32 %s64, 1
      %s66 = scalar_select %p63, %s64, %s65
      %p69 = pneg %p63
      %p70 = scmp.eq.s32.totalorder %s16, 1
      %p71 = por %p69, %p70
      %p72 = scmp.ne.s32.totalorder %s64, %s67
      %p73 = scmp.eq.s32.totalorder %s16, 0
      %p74 = por %p72, %p73
      %p75 = scmp.ne.s32.totalorder %s64, %s67
      %p76 = scmp.eq.s32.totalorder %s21, 1
      %p77 = por %p75, %p76
      %p78 = scmp.ne.s32.totalorder %s67, %s68
      %p79 = scmp.eq.s32.totalorder %s21, 0
      %p80 = por %p78, %p79
      %p81 = scmp.ne.s32.totalorder %s67, %s68
      %p82 = scmp.eq.s32.totalorder %s22, 1
      %p83 = por %p81, %p82
      %p85 = scmp.ne.s32.totalorder %s68, %s84
      %p86 = scmp.eq.s32.totalorder %s22, 0
      %p87 = por %p85, %p86
      %s89 = sadd.s32 %s88, 1
      %p92 = scmp.eq.s32.totalorder %s16, 1
      %p93 = scmp.ne.s32.totalorder %s88, %s90
      %p94 = scmp.eq.s32.totalorder %s16, 0
      %p95 = por %p93, %p94
      %p96 = scmp.ne.s32.totalorder %s88, %s90
      %p97 = scmp.eq.s32.totalorder %s21, 1
      %p98 = por %p96, %p97
      %p99 = scmp.ne.s32.totalorder %s90, %s91
      %p100 = scmp.eq.s32.totalorder %s21, 0
      %p101 = por %p99, %p100
      %p102 = scmp.ne.s32.totalorder %s90, %s91
      %p103 = scmp.eq.s32.totalorder %s22, 1
      %p104 = por %p102, %p103
      %p106 = scmp.ne.s32.totalorder %s91, %s105
      %p107 = scmp.eq.s32.totalorder %s22, 0
      %p108 = por %p106, %p107
      %s109 = ssub.s32 %s23, %s35
      %s110 = ssub.s32 %s24, %s31
      %s111 = sor.u32 %s109, %s110
      %p112 = scmp.eq.s32.totalorder %s111, 0
      %s114 = sadd.s32 %s113, 1
      %s115 = scalar_select %p112, %s113, %s114
      %p118 = pneg %p112
      %p119 = scmp.eq.s32.totalorder %s16, 1
      %p120 = por %p118, %p119
      %p121 = scmp.ne.s32.totalorder %s113, %s116
      %p122 = scmp.eq.s32.totalorder %s16, 0
      %p123 = por %p121, %p122
      %p124 = scmp.ne.s32.totalorder %s113, %s116
      %p125 = scmp.eq.s32.totalorder %s21, 1
      %p126 = por %p124, %p125
      %p127 = scmp.ne.s32.totalorder %s116, %s117
      %p128 = scmp.eq.s32.totalorder %s21, 0
      %p129 = por %p127, %p128
      %p130 = scmp.ne.s32.totalorder %s116, %s117
      %p131 = scmp.eq.s32.totalorder %s22, 1
      %p132 = por %p130, %p131
      %p134 = scmp.ne.s32.totalorder %s117, %s133
      %p135 = scmp.eq.s32.totalorder %s22, 0
      %p136 = por %p134, %p135
      %p137 = scmp.le.s32.totalorder 1, %s16
      %p138 = scmp.lt.s32.totalorder %s16, 3
      %p139 = pnand %p137, %p138
      %p140 = pneg %p139
      // Predicated region
      $region9: #{tpu_custom_call.1} parent=5 // pred_check
        _
      $region10: #{tpu_custom_call.1} parent=5 // pred_check_branch
        %142 = sbr.rel (%p139) target = $region12
      $region11: #{tpu_custom_call.1} parent=5 // pred_region
        %s143 = ssub.s32 %s16, 1
        // Predicated region
        $region13: #{tpu_custom_call.1} parent=11 // pred_check
          %p144 = pneg %p80
        $region14: #{tpu_custom_call.1} parent=11 // pred_check_branch
          %146 = sbr.rel (%p144) target = $region16
        $region15: #{tpu_custom_call.1} parent=11 // pred_region
          %s148 = ssub.s32 2048, 2048
          %149 = vsyncadd [#allocation6], %s148
          %s150 = smul.addr %s26, 128
          %s151 = scalar_lea.hbm %s1, %s150
          %s152 = sshll.u32 [#allocation5], 4
          %s153 = int_to_ptr.vmem [resolvable:$true] %s152
          %158 = dma.hbm_to_vmem [thread:$0]  %s151, 2048, %s153, [#allocation6], 128, 128, 8
        $region16: #{tpu_custom_call.1} parent=11 // pred_fallthru
          _
        // Predicated region
        $region17: #{tpu_custom_call.1} parent=11 // pred_check
          %p159 = pneg %p101
        $region18: #{tpu_custom_call.1} parent=11 // pred_check_branch
          %161 = sbr.rel (%p159) target = $region20
        $region19: #{tpu_custom_call.1} parent=11 // pred_region
          %s163 = ssub.s32 128, 128
          %164 = vsyncadd [#allocation6], %s163
          %s166 = sshll.u32 [#allocation7], 4
          %s167 = int_to_ptr.vmem [resolvable:$true] %s166
          %169 = dma.hbm_to_vmem [thread:$0]  %s2, 128, %s167, [#allocation6]
        $region20: #{tpu_custom_call.1} parent=11 // pred_fallthru
          _
      $region12: #{tpu_custom_call.1} parent=5 // pred_fallthru
        _
      %p170 = scmp.lt.s32.totalorder %s16, 2
      // Predicated region
      $region21: #{tpu_custom_call.1} parent=5 // pred_check
        %p171 = pneg %p170
      $region22: #{tpu_custom_call.1} parent=5 // pred_check_branch
        %173 = sbr.rel (%p171) target = $region24
      $region23: #{tpu_custom_call.1} parent=5 // pred_region
        // Predicated region
        $region25: #{tpu_custom_call.1} parent=23 // pred_check
          %p174 = pneg %p48
        $region26: #{tpu_custom_call.1} parent=23 // pred_check_branch
          %176 = sbr.rel (%p174) target = $region28
        $region27: #{tpu_custom_call.1} parent=23 // pred_region
          %s177 = sand.u32 %s38, 1
          %s178 = scalar_lea.sflag [#allocation3], %s177
          %s179 = sand.u32 %s38, 1
          %s180 = smul.addr %s179, 8
          %s181 = scalar_lea.vmem [#allocation2], %s180
          %s183 = ssub.s32 128, 128
          %184 = vsyncadd %s178, %s183
          %s185 = smul.addr %s23, 128
          %s186 = scalar_lea.hbm %s0, %s185
          %s188 = sshll.u32 %s181, 4
          %s189 = int_to_ptr.vmem [resolvable:$true] %s188
          %191 = dma.hbm_to_vmem [thread:$0]  %s186, 128, %s189, %s178
        $region28: #{tpu_custom_call.1} parent=23 // pred_fallthru
          _
      $region24: #{tpu_custom_call.1} parent=5 // pred_fallthru
        _
      %p192 = scmp.le.s32.totalorder 1, %s16
      %p193 = scmp.lt.s32.totalorder %s16, 3
      %p194 = pnand %p192, %p193
      %p195 = pneg %p194
      // Predicated region
      $region29: #{tpu_custom_call.1} parent=5 // pred_check
        _
      $region30: #{tpu_custom_call.1} parent=5 // pred_check_branch
        %197 = sbr.rel (%p194) target = $region32
      $region31: #{tpu_custom_call.1} parent=5 // pred_region
        %s198 = ssub.s32 %s16, 1
        %s199 = sand.u32 %s41, 1
        %s200 = scalar_lea.sflag [#allocation3], %s199
        %s201 = sand.u32 %s41, 1
        %s202 = smul.addr %s201, 8
        %s203 = scalar_lea.vmem [#allocation2], %s202
        // Predicated region
        $region33: #{tpu_custom_call.1} parent=31 // pred_check
          %p204 = pneg %p54
        $region34: #{tpu_custom_call.1} parent=31 // pred_check_branch
          %206 = sbr.rel (%p204) target = $region36
        $region35: #{tpu_custom_call.1} parent=31 // pred_region
          %207 = dma.done %s200, 128
        $region36: #{tpu_custom_call.1} parent=31 // pred_fallthru
          _
        // Predicated region
        $region37: #{tpu_custom_call.1} parent=31 // pred_check
          %p208 = pneg %p80
        $region38: #{tpu_custom_call.1} parent=31 // pred_check_branch
          %210 = sbr.rel (%p208) target = $region40
        $region39: #{tpu_custom_call.1} parent=31 // pred_region
          %211 = dma.done [#allocation6], 2048
        $region40: #{tpu_custom_call.1} parent=31 // pred_fallthru
          _
        // Predicated region
        $region41: #{tpu_custom_call.1} parent=31 // pred_check
          %p212 = pneg %p101
        $region42: #{tpu_custom_call.1} parent=31 // pred_check_branch
          %214 = sbr.rel (%p212) target = $region44
        $region43: #{tpu_custom_call.1} parent=31 // pred_region
          %215 = dma.done [#allocation6], 128
        $region44: #{tpu_custom_call.1} parent=31 // pred_fallthru
          _
        %s216 = sand.u32 %s41, 1
        %s217 = scalar_lea.sflag [#allocation3], %s216
        %s218 = sand.u32 %s41, 1
        %s219 = smul.addr %s218, 8
        %s220 = scalar_lea.vmem [#allocation2], %s219
        %p221 = pneg %p54
        %p222 = pneg %p51
        %p223 = pneg %p80
        %p224 = pneg %p77
        %p225 = pneg %p101
        %p226 = pneg %p98
        %p227 = pneg %p129
        %p228 = pneg %p126
        %s229 = sand.u32 %s116, 1
        %s230 = scalar_lea.sflag [#allocation4], %s229
        %s231 = sand.u32 %s116, 1
        %s232 = smul.addr %s231, 8
        %s233 = scalar_lea.vmem [#allocation8], %s232
        %v234 = vld [vmem:[%s203] sm:$0xff]
        %v235 = vlaneseq
        %v236 = vand.u32 %v235, 127
        %vm237 = vcmp.lt.s32.totalorder %v236, 32
        %v238 = vsel %vm237, 1, 0
        %v239 = vcvt.s32.f32 %v238
        %v240 = vmul.f32 %v234, %v239
        %241 = vadd.xlane.f32.xlu0 %v240
        %v242 = vpop.xlane.xlu0 %241
        %v243 = vmul.f32 %v240, %v240
        %244 = vadd.xlane.f32.xlu0 %v243
        %v245 = vpop.xlane.xlu0 %244
        %v246 = vmul.f32 %v242, 0.03125
        %v247 = vmul.f32 %v245, 0.03125
        %v248 = vmul.f32 %v246, %v246
        %v249 = vsub.f32 %v247, %v248
        %v250 = vmax.f32 %v249, 0.0
        %v251 = vsub.f32 %v240, %v246
        %v252 = vadd.f32 %v250, 1e-05
        %v253 = vrsqrt.pop %v252
        %v254 = vmul.f32 %v251, %v253
        %v255 = vld [vmem:[#allocation7 + $0x1] sm:$0x1]
        %v256 = vlaneseq
        %v257 = vshrl.u32 %v256, 7
        %v258 = vsub.s32 0, %v257
        %v259 = vrot.slane %v255, %v258
        %v260 = vmul.f32 %v254, %v259
        %v261 = vld [vmem:[#allocation7 + $0x2] sm:$0x1]
        %v262 = vlaneseq
        %v263 = vshrl.u32 %v262, 7
        %v264 = vsub.s32 0, %v263
        %v265 = vrot.slane %v261, %v264
        %v266 = vadd.f32 %v260, %v265
        %v267 = vld [vmem:[#allocation5] sm:$0xff]
        %v268 = vld [vmem:[#allocation5 + $0x8] sm:$0xff]
        %v269 = vld [vmem:[#allocation5 + $0x10] sm:$0xff]
        %v270 = vld [vmem:[#allocation5 + $0x18] sm:$0xff]
        %v271 = vld [vmem:[#allocation5 + $0x20] sm:$0xff]
        %v272 = vld [vmem:[#allocation5 + $0x28] sm:$0xff]
        %v273 = vld [vmem:[#allocation5 + $0x30] sm:$0xff]
        %v274 = vld [vmem:[#allocation5 + $0x38] sm:$0xff]
        %v275 = vld [vmem:[#allocation5 + $0x40] sm:$0xff]
        %v276 = vld [vmem:[#allocation5 + $0x48] sm:$0xff]
        %v277 = vld [vmem:[#allocation5 + $0x50] sm:$0xff]
        %v278 = vld [vmem:[#allocation5 + $0x58] sm:$0xff]
        %v279 = vld [vmem:[#allocation5 + $0x60] sm:$0xff]
        %v280 = vld [vmem:[#allocation5 + $0x68] sm:$0xff]
        %v281 = vld [vmem:[#allocation5 + $0x70] sm:$0xff]
        %v282 = vld [vmem:[#allocation5 + $0x78] sm:$0xff]
        %v283 = vld [vmem:[#allocation7] sm:$0x1]
        %v284 = vlaneseq
        %v285 = vshrl.u32 %v284, 7
        %v286 = vsub.s32 0, %v285
        %v287 = vrot.slane %v283, %v286
        %288 = vmatprep.subr.mxu0 0.0
        %289 = vmatpush1.msra.mxu0 %v267
        %290 = vmatprep.subr.mxu0 0.0
        %291 = vmatpush1.msra.mxu0 %v268
        %292 = vmatprep.subr.mxu0 0.0
        %293 = vmatpush1.msra.mxu0 %v269
        %294 = vmatprep.subr.mxu0 0.0
        %295 = vmatpush1.msra.mxu0 %v270
        %296 = vmatprep.subr.mxu0 0.0
        %297 = vmatpush1.msra.mxu0 %v271
        %298 = vmatprep.subr.mxu0 0.0
        %299 = vmatpush1.msra.mxu0 %v272
        %300 = vmatprep.subr.mxu0 0.0
        %301 = vmatpush1.msra.mxu0 %v273
        %302 = vmatprep.subr.mxu0 0.0
        %303 = vmatpush1.msra.mxu0 %v274
        %304 = vmatprep.subr.mxu0 0.0
        %305 = vmatpush1.msra.mxu0 %v275
        %306 = vmatprep.subr.mxu0 0.0
        %307 = vmatpush1.msra.mxu0 %v276
        %308 = vmatprep.subr.mxu0 0.0
        %309 = vmatpush1.msra.mxu0 %v277
        %310 = vmatprep.subr.mxu0 0.0
        %311 = vmatpush1.msra.mxu0 %v278
        %312 = vmatprep.subr.mxu0 0.0
        %313 = vmatpush1.msra.mxu0 %v279
        %314 = vmatprep.subr.mxu0 0.0
        %315 = vmatpush1.msra.mxu0 %v280
        %316 = vmatprep.subr.mxu0 0.0
        %317 = vmatpush1.msra.mxu0 %v281
        %318 = vmatprep.subr.mxu0 0.0
        %319 = vmatpush1.msra.mxu0 %v282
        %320 = vmatprep.subr.mxu0 0.0
        %321 = vmatpush1.msra.mxu0 0.0
        %322 = vmatprep.subr.mxu0 0.0
        %323 = vmatpush1.msra.mxu0 0.0
        %324 = vmatprep.subr.mxu0 0.0
        %325 = vmatpush1.msra.mxu0 0.0
        %326 = vmatprep.subr.mxu0 0.0
        %327 = vmatpush1.msra.mxu0 0.0
        %328 = vmatprep.subr.mxu0 0.0
        %329 = vmatpush1.msra.mxu0 0.0
        %330 = vmatprep.subr.mxu0 0.0
        %331 = vmatpush1.msra.mxu0 0.0
        %332 = vmatprep.subr.mxu0 0.0
        %333 = vmatpush1.msra.mxu0 0.0
        %334 = vmatprep.subr.mxu0 0.0
        %335 = vmatpush1.msra.mxu0 0.0
        %336 = vmatprep.subr.mxu0 0.0
        %337 = vmatpush1.msra.mxu0 0.0
        %338 = vmatprep.subr.mxu0 0.0
        %339 = vmatpush1.msra.mxu0 0.0
        %340 = vmatprep.subr.mxu0 0.0
        %341 = vmatpush1.msra.mxu0 0.0
        %342 = vmatprep.subr.mxu0 0.0
        %343 = vmatpush1.msra.mxu0 0.0
        %344 = vmatprep.subr.mxu0 0.0
        %345 = vmatpush1.msra.mxu0 0.0
        %346 = vmatprep.subr.mxu0 0.0
        %347 = vmatpush1.msra.mxu0 0.0
        %348 = vmatprep.subr.mxu0 0.0
        %349 = vmatpush1.msra.mxu0 0.0
        %350 = vmatprep.subr.mxu0 0.0
        %351 = vmatpush1.msra.mxu0 0.0
        %352 = vmatprep.mubr.f32.mxu0 0.0
        %353 = vmatmul.mubr.f32.gmra.mrb[0].mxu0 %v266
        %v354 = vpop.f32.mrb[0].mxu0
        %v355 = vadd.f32 %v287, %v354
        %v356 = vpop.f32.mrb[0].mxu0
        %357 = vdwg.mxu0
        %v358 = vadd.f32 %v234, %v355
        %359 = vst [vmem:[%s233] sm:$0xff] %v358
        %s360 = sand.u32 %s116, 1
        %s361 = scalar_lea.sflag [#allocation4], %s360
        %s362 = sand.u32 %s116, 1
        %s363 = smul.addr %s362, 8
        %s364 = scalar_lea.vmem [#allocation8], %s363
        // Predicated region
        $region45: #{tpu_custom_call.1} parent=31 // pred_check
          %p365 = pneg %p126
        $region46: #{tpu_custom_call.1} parent=31 // pred_check_branch
          %367 = sbr.rel (%p365) target = $region48
        $region47: #{tpu_custom_call.1} parent=31 // pred_region
          %s369 = ssub.s32 128, 128
          %370 = vsyncadd %s361, %s369
          %s371 = sadd.s32 %s26, %s25
          %s372 = smul.addr %s371, 128
          %s373 = scalar_lea.hbm %s3, %s372
          %s375 = sshll.u32 %s364, 4
          %s376 = int_to_ptr.vmem [resolvable:$true] %s375
          %378 = dma.vmem_to_hbm [thread:$0]  %s376, 128, %s373, %s361
        $region48: #{tpu_custom_call.1} parent=31 // pred_fallthru
          _
      $region32: #{tpu_custom_call.1} parent=5 // pred_fallthru
        _
      %p379 = scmp.le.s32.totalorder 2, %s16
      // Predicated region
      $region49: #{tpu_custom_call.1} parent=5 // pred_check
        %p380 = pneg %p379
      $region50: #{tpu_custom_call.1} parent=5 // pred_check_branch
        %382 = sbr.rel (%p380) target = $region52
      $region51: #{tpu_custom_call.1} parent=5 // pred_region
        %s383 = ssub.s32 %s16, 2
        // Predicated region
        $region53: #{tpu_custom_call.1} parent=51 // pred_check
          %p384 = pneg %p132
        $region54: #{tpu_custom_call.1} parent=51 // pred_check_branch
          %386 = sbr.rel (%p384) target = $region56
        $region55: #{tpu_custom_call.1} parent=51 // pred_region
          %s387 = sand.u32 %s117, 1
          %s388 = scalar_lea.sflag [#allocation4], %s387
          %s389 = sand.u32 %s117, 1
          %s390 = smul.addr %s389, 8
          %s391 = scalar_lea.vmem [#allocation8], %s390
          %392 = dma.done %s388, 128
        $region56: #{tpu_custom_call.1} parent=51 // pred_fallthru
          _
      $region52: #{tpu_custom_call.1} parent=5 // pred_fallthru
        _
    $region6: #{tpu_custom_call.1} parent=1 // loop_footer
      %s20 = sadd.s32 1, %s16
    $region7: #{tpu_custom_call.1} parent=1 // loop_footer_branch
      %15 = sbr.rel target = $region3
    $region8: #{tpu_custom_call.1} parent=1 // loop_exit
      _
    %393 = vsyncpa [#allocation3], 1
    %s394 = scalar_lea.sflag [#allocation3], 1
    %395 = vsyncpa %s394, 1
    %396 = vsyncpa [#allocation6], 1
    %397 = vsyncpa [#allocation4], 1
    %s398 = scalar_lea.sflag [#allocation4], 1
    %399 = vsyncpa %s398, 1

</llo_original>
